<compile_context>
chip_gen: v7x
topology: tpu7x:2x2x1
jax: 0.10.0
libtpu: 0.0.40
codegen_flags: <defaults>
</compile_context>

<pallas_src>
import functools

import jax
import jax.numpy as jnp
from jax.experimental import pallas as pl
from jax.experimental.pallas import tpu as pltpu


def _ce_partial_kernel(logits_ref, labels_ref, out_ref, *, n_total):
    """Writes the partial sum of (logsumexp(x_i) - x_i[label_i]) for this row tile."""
    i = pl.program_id(0)

    x = logits_ref[...].astype(jnp.float32)            # (TN, C) upcast on load
    lab = labels_ref[...]                               # (TN, 1) int32
    tn, c = x.shape

    # Numerically-stable log-sum-exp over the class (lane) axis.
    m = jnp.max(x, axis=-1, keepdims=True)                                   # (TN, 1)
    lse = m + jnp.log(jnp.sum(jnp.exp(x - m), axis=-1, keepdims=True))       # (TN, 1)

    # Gather the logit at the label index via a VPU one-hot compare (no XLU gather).
    col = jax.lax.broadcasted_iota(jnp.int32, (tn, c), 1)                    # (TN, C)
    picked = jnp.sum(jnp.where(col == lab, x, 0.0), axis=-1, keepdims=True)  # (TN, 1)

    per_example = lse - picked                                               # (TN, 1)

    # Mask rows that fall past the true batch size (ragged last tile).
    row = jax.lax.broadcasted_iota(jnp.int32, (tn, 1), 0) + i * tn           # (TN, 1)
    masked = jnp.where(row < n_total, per_example, 0.0)

    # One small store per grid step into this tile's own (1, 1) output block.
    out_ref[0] = jnp.sum(masked, axis=0, keepdims=True)                      # (1, 1)


def _choose_tile_rows(n, c, itemsize, target_bytes=2 * 1024 * 1024):
    """Largest multiple-of-8 row tile with block bytes <= target (~2 MiB per buffer)."""
    if n <= 8:
        return int(n)  # block dim equal to the full array dim is always legal
    tr = max(8, (target_bytes // max(c * itemsize, 1)) // 8 * 8)
    tr = min(tr, (n // 8) * 8)
    return int(max(tr, 8))


def class_loss(yc: jax.Array, label: jax.Array, *, tile_rows: int | None = None) -> jax.Array:
    """CrossEntropyLoss(yc, label) with mean reduction. yc: (N, C) float, label: (N,) int."""
    n, c = yc.shape
    itemsize = jnp.dtype(yc.dtype).itemsize
    if tile_rows is None:
        tile_rows = _choose_tile_rows(n, c, itemsize)
    num_tiles = (n + tile_rows - 1) // tile_rows

    labels_2d = label.astype(jnp.int32).reshape(n, 1)

    kernel = functools.partial(_ce_partial_kernel, n_total=n)

    partials = pl.pallas_call(
        kernel,
        out_shape=jax.ShapeDtypeStruct((num_tiles, 1, 1), jnp.float32),
        grid_spec=pl.GridSpec(
            grid=(num_tiles,),
            in_specs=[
                pl.BlockSpec((tile_rows, c), lambda i: (i, 0)),   # logits tile
                pl.BlockSpec((tile_rows, 1), lambda i: (i, 0)),   # labels tile
            ],
            out_specs=pl.BlockSpec((1, 1, 1), lambda i: (i, 0, 0)),
        ),
        compiler_params=pltpu.CompilerParams(
            dimension_semantics=("parallel",),          # independent tiles -> megacore on v7x
            vmem_limit_bytes=32 * 1024 * 1024,          # safe headroom on v5e/v6e/v7x
        ),
        cost_estimate=pl.CostEstimate(
            flops=5 * n * c,
            transcendentals=n * c + n,
            bytes_accessed=n * c * itemsize + n * 4 + num_tiles * 4,
        ),
    )(yc, labels_2d)

    # Tiny final reduction + single 1/N normalization in the wrapper.
    return jnp.sum(partials) / jnp.float32(n)


if __name__ == "__main__":
    key = jax.random.PRNGKey(0)
    k1, k2, k3, k4 = jax.random.split(key, 4)

    # Primary small case (matches module forward): logits (N, C), labels (N,)
    N, C = 8, 32
    yc = jax.random.normal(k1, (N, C), dtype=jnp.float32)
    label = jax.random.randint(k2, (N,), 0, C, dtype=jnp.int32)

    loss = class_loss(yc, label)
    jax.block_until_ready(loss)

    ref = jnp.mean(
        jax.nn.logsumexp(yc, axis=-1)
        - jnp.take_along_axis(yc, label[:, None], axis=-1)[:, 0]
    )
    assert jnp.allclose(loss, ref, rtol=1e-5, atol=1e-5), (loss, ref)

    # Multi-tile case with a ragged last block and bf16 logits (native-dtype streaming).
    N2, C2 = 20, 32
    yc2_f32 = jax.random.normal(k3, (N2, C2), dtype=jnp.float32)
    yc2 = yc2_f32.astype(jnp.bfloat16)
    label2 = jax.random.randint(k4, (N2,), 0, C2, dtype=jnp.int32)

    loss2 = class_loss(yc2, label2, tile_rows=8)  # grid=3, last tile padded & masked
    jax.block_until_ready(loss2)

    yc2_up = yc2.astype(jnp.float32)
    ref2 = jnp.mean(
        jax.nn.logsumexp(yc2_up, axis=-1)
        - jnp.take_along_axis(yc2_up, label2[:, None], axis=-1)[:, 0]
    )
    assert jnp.allclose(loss2, ref2, rtol=2e-2, atol=2e-2), (loss2, ref2)

    print("KERNEL_OK")
</pallas_src>

<mosaic_0001>
module attributes {stable_mosaic.version = 11 : i64} {
  func.func @_ce_partial_kernel(%arg0: i32, %arg1: memref<8x32xf32, #tpu.memory_space<vmem>>, %arg2: memref<8x1xi32, #tpu.memory_space<vmem>>, %arg3: memref<1x1x1xf32, #tpu.memory_space<vmem>>) attributes {dimension_semantics = [#tpu.dimension_semantics<parallel>], iteration_bounds = array<i64: 1>, scalar_prefetch = 0 : i64, scratch_operands = 0 : i64, tpu.core_type = #tpu.core_type<tc>, window_params = [{transform_indices = @transform_0, window_bounds = array<i64: 8, 32>}, {transform_indices = @transform_1, window_bounds = array<i64: 8, 1>}, {transform_indices = @transform_2, window_bounds = array<i64: 1, 1, 1>}]} {
    %c0 = arith.constant 0 : index
    %c0_0 = arith.constant 0 : index
    %0 = vector.load %arg1[%c0, %c0_0] : memref<8x32xf32, #tpu.memory_space<vmem>>, vector<8x32xf32>
    %c0_1 = arith.constant 0 : index
    %c0_2 = arith.constant 0 : index
    %1 = vector.load %arg2[%c0_1, %c0_2] : memref<8x1xi32, #tpu.memory_space<vmem>>, vector<8x1xi32>
    %cst = arith.constant dense<0xFF800000> : vector<8xf32>
    %2 = vector.multi_reduction <maximumf>, %0, %cst [1] : vector<8x32xf32> to vector<8xf32>
    %3 = vector.shape_cast %2 : vector<8xf32> to vector<8x1xf32>
    %4 = vector.broadcast %3 : vector<8x1xf32> to vector<8x32xf32>
    %5 = arith.subf %0, %4 : vector<8x32xf32>
    %6 = math.exp %5 : vector<8x32xf32>
    %cst_3 = arith.constant dense<0.000000e+00> : vector<8xf32>
    %7 = vector.multi_reduction <add>, %6, %cst_3 [1] : vector<8x32xf32> to vector<8xf32>
    %8 = vector.shape_cast %7 : vector<8xf32> to vector<8x1xf32>
    %9 = math.log %8 : vector<8x1xf32>
    %10 = arith.addf %3, %9 : vector<8x1xf32>
    %11 = tpu.iota {dimensions = array<i32: 1>} : vector<8x32xi32>
    %12 = vector.broadcast %1 : vector<8x1xi32> to vector<8x32xi32>
    %13 = arith.cmpi eq, %11, %12 : vector<8x32xi32>
    %cst_4 = arith.constant 0.000000e+00 : f32
    %14 = vector.broadcast %cst_4 : f32 to vector<8x32xf32>
    %15 = arith.select %13, %0, %14 : vector<8x32xi1>, vector<8x32xf32>
    %cst_5 = arith.constant dense<0.000000e+00> : vector<8xf32>
    %16 = vector.multi_reduction <add>, %15, %cst_5 [1] : vector<8x32xf32> to vector<8xf32>
    %17 = vector.shape_cast %16 : vector<8xf32> to vector<8x1xf32>
    %18 = arith.subf %10, %17 : vector<8x1xf32>
    %19 = tpu.iota {dimensions = array<i32: 0>} : vector<8x1xi32>
    %c8_i32 = arith.constant 8 : i32
    %20 = arith.muli %arg0, %c8_i32 : i32
    %21 = vector.broadcast %20 : i32 to vector<8x1xi32>
    %22 = arith.addi %19, %21 : vector<8x1xi32>
    %c8_i32_6 = arith.constant 8 : i32
    %23 = vector.broadcast %c8_i32_6 : i32 to vector<8x1xi32>
    %24 = arith.cmpi slt, %22, %23 : vector<8x1xi32>
    %cst_7 = arith.constant 0.000000e+00 : f32
    %25 = vector.broadcast %cst_7 : f32 to vector<8x1xf32>
    %26 = arith.select %24, %18, %25 : vector<8x1xi1>, vector<8x1xf32>
    %cst_8 = arith.constant dense<0.000000e+00> : vector<1xf32>
    %27 = vector.multi_reduction <add>, %26, %cst_8 [0] : vector<8x1xf32> to vector<1xf32>
    %28 = vector.shape_cast %27 : vector<1xf32> to vector<1x1xf32>
    %c0_9 = arith.constant 0 : index
    %c0_10 = arith.constant 0 : index
    %c0_11 = arith.constant 0 : index
    %29 = vector.load %arg3[%c0_9, %c0_10, %c0_11] : memref<1x1x1xf32, #tpu.memory_space<vmem>>, vector<1x1x1xf32>
    %30 = vector.shape_cast %29 : vector<1x1x1xf32> to vector<1x1xf32>
    %31 = vector.shape_cast %28 : vector<1x1xf32> to vector<1x1x1xf32>
    tpu.vector_store %arg3[%c0_9, %c0_10, %c0_11], %31 {strides = array<i32>} : memref<1x1x1xf32, #tpu.memory_space<vmem>>, vector<1x1x1xf32>,
    return
  }
  func.func @transform_0(%arg0: i32) -> (i32, i32) {
    %c0_i32 = arith.constant 0 : i32
    %c0_i32_0 = arith.constant 0 : i32
    return %arg0, %c0_i32 : i32, i32
  }
  func.func @transform_1(%arg0: i32) -> (i32, i32) {
    %c0_i32 = arith.constant 0 : i32
    %c0_i32_0 = arith.constant 0 : i32
    return %arg0, %c0_i32 : i32, i32
  }
  func.func @transform_2(%arg0: i32) -> (i32, i32, i32) {
    %c0_i32 = arith.constant 0 : i32
    %c0_i32_0 = arith.constant 0 : i32
    %c0_i32_1 = arith.constant 0 : i32
    return %arg0, %c0_i32, %c0_i32_0 : i32, i32, i32
  }
}

</mosaic_0001>

<llo_original>
// kernel: tpu_custom_call.1
$region0: #{tpu_custom_call.1}
  #allocation0 [shape = 'u32[]', space=smem, size = 0x4, offset = 0x4, fixed_abs, tag = 'smem constant byte address 0x4 - core index']
  #allocation1 [shape = 'u32[144,128]{1,0:T(1,128)}', space=vmem, size = 0x12000, scoped, tag = 'internal scratch']
  %s0 = inlined_call_operand.vmem [shape: f32[8,32], index: 0, kind: input, shape index: {}]
  %s1 = inlined_call_operand.vmem [shape: s32[8,1], index: 1, kind: input, shape index: {}]
  %s2 = inlined_call_operand.hbm [shape: f32[1,1,1], index: 2, kind: output, shape index: {}]
  %s3 = sld [smem:[#allocation0]]
  $region18: #{tpu_custom_call.1} parent=0
    _
  %s5 = ssub.s32 1, %s3
  %s6 = scalar_select 0, %s5, %s3
  $region1: #{tpu_custom_call.1} parent=0
    #allocation2 [shape = 'u8[512]{0}', space=vmem, size = 0x400, scoped, tag = 'output window, operand 0, single buffered']
    #allocation3 [shape = 's32[1]{0}', space=sflag, size = 0x4, scoped, tag = 'scoped memory for tpu_custom_call.1']
    %7 = vsyncpa [#allocation3], 0
    // Predicated region
    $region2: #{tpu_custom_call.1} parent=1 // pred_check
      _
    $region3: #{tpu_custom_call.1} parent=1 // pred_check_branch
      %9 = sbr.rel (0) target = $region5
    $region4: #{tpu_custom_call.1} parent=1 // pred_region
      _
    $region5: #{tpu_custom_call.1} parent=1 // pred_fallthru
      _
    // Predicated region
    $region6: #{tpu_custom_call.1} parent=1 // pred_check
      _
    $region7: #{tpu_custom_call.1} parent=1 // pred_check_branch
      %11 = sbr.rel (0) target = $region9
    $region8: #{tpu_custom_call.1} parent=1 // pred_region
      _
    $region9: #{tpu_custom_call.1} parent=1 // pred_fallthru
      _
    %v12 = vld [vmem:[%s0] sm:$0xff]
    %v13 = vld [vmem:[%s1] sm:$0xff]
    %vm14 = vcmask 261120
    %v15 = vsel %vm14, %v12, -inf
    %16 = vmax.xlane.f32.xlu0 %v15
    %v17 = vpop.xlane.xlu0 %16
    %v18 = vsub.f32 %v12, %v17
    %v19 = vmul.f32 %v18, 1.442695
    %v20 = vpow.pop %v19
    %v21 = vsel %vm14, %v20, 0.0
    %22 = vadd.xlane.f32.xlu0 %v21
    %v23 = vpop.xlane.xlu0 %22
    %v24 = vlog2.pop %v23
    %v25 = vmul.f32 %v24, 0.6931472
    %v26 = vadd.f32 %v17, %v25
    %v27 = vlaneseq
    %v28 = vand.u32 %v27, 127
    %29 = vset.pattern.permute.xlu0 0
    %30 = vperm.xlu0 %29, %v13
    %v31 = vpop.permute.xlu0 %30
    %vm32 = vcmp.eq.s32.totalorder %v28, %v31
    %v33 = vsel %vm32, %v12, 0.0
    %v34 = vsel %vm14, %v33, 0.0
    %35 = vadd.xlane.f32.xlu0 %v34
    %v36 = vpop.xlane.xlu0 %35
    %v37 = vsub.f32 %v26, %v36
    %v38 = vlaneseq
    %v39 = vshrl.u32 %v38, 7
    %s40 = smul.u32 0, 8
    %v41 = vstv %s40
    %v42 = vadd.s32 %v39, %v41
    %vm43 = vcmp.lt.s32.totalorder %v42, 8
    %v44 = vsel %vm43, %v37, 0.0
    %v45 = vrot.slane %v44, 4
    %v46 = vadd.f32 %v44, %v45
    %v47 = vrot.slane %v46, 2
    %v48 = vadd.f32 %v46, %v47
    %v49 = vrot.slane %v48, 1
    %v50 = vadd.f32 %v48, %v49
    %vm51 = vcmask 0
    %52 = vst.msk [vmem:[#allocation2] sm:$0x1] %vm51, %v50
    // Predicated region
    $region10: #{tpu_custom_call.1} parent=1 // pred_check
      _
    $region11: #{tpu_custom_call.1} parent=1 // pred_check_branch
      %54 = sbr.rel (0) target = $region13
    $region12: #{tpu_custom_call.1} parent=1 // pred_region
      %s56 = ssub.s32 16, 16
      %57 = vsyncadd [#allocation3], %s56
      %s59 = sshll.u32 [#allocation2], 4
      %s60 = int_to_ptr.vmem [resolvable:$true] %s59
      %62 = dma.vmem_to_hbm [thread:$0]  %s60, 16, %s2, [#allocation3]
    $region13: #{tpu_custom_call.1} parent=1 // pred_fallthru
      _
    // Predicated region
    $region14: #{tpu_custom_call.1} parent=1 // pred_check
      _
    $region15: #{tpu_custom_call.1} parent=1 // pred_check_branch
      %64 = sbr.rel (0) target = $region17
    $region16: #{tpu_custom_call.1} parent=1 // pred_region
      %65 = dma.done [#allocation3], 16
    $region17: #{tpu_custom_call.1} parent=1 // pred_fallthru
      _
    %66 = vsyncpa [#allocation3], 1

</llo_original>
